<compile_context>
chip_gen: v7x
topology: tpu7x:2x2x1
jax: 0.10.0
libtpu: 0.0.40
codegen_flags: <defaults>
</compile_context>

<pallas_src>
import functools

import jax
import jax.numpy as jnp
import numpy as np
from jax import lax
from jax.experimental import pallas as pl
from jax.experimental.pallas import tpu as pltpu

_VMEM_LIMIT = 32 * 1024 * 1024


def _layer_norm(u, w, b, eps=1e-5):
    mu = jnp.mean(u, axis=-1, keepdims=True)
    var = jnp.mean((u - mu) ** 2, axis=-1, keepdims=True)
    return (u - mu) * lax.rsqrt(var + eps) * w + b


# ---------------------------------------------------------------------------
# Pass 1: streaming spatial-sum reduction over (R, HW) blocks.
# ---------------------------------------------------------------------------
def reduce_kernel(x_ref, psum_ref, *, hw, hw_tile, npc, chunk_w, need_mask):
    p = pl.program_id(0)          # "parallel" core-split axis
    j = pl.program_id(1)          # "arbitrary" sequential chunk axis

    @pl.when(j == 0)
    def _():
        psum_ref[...] = jnp.zeros_like(psum_ref)

    rows = x_ref.shape[0]
    if need_mask:
        # Unclamped global lane offset of this block; clamped/padded blocks
        # and the ragged tail are zeroed by the mask below.
        base = (p * npc + j) * hw_tile
        lane_main = lax.broadcasted_iota(
            jnp.int32, (rows, min(chunk_w, hw_tile)), 1)

    # Static inner chunking keeps vreg-resident intermediates small and uses
    # only static slices of the VMEM block (no dynamic lane slicing).
    total = jnp.zeros((rows, 1), jnp.float32)
    q0 = 0
    while q0 < hw_tile:
        w = min(chunk_w, hw_tile - q0)
        col = x_ref[:, q0:q0 + w].astype(jnp.float32)
        if need_mask:
            lane = (lane_main if w == lane_main.shape[1]
                    else lax.broadcasted_iota(jnp.int32, (rows, w), 1))
            col = jnp.where(base + q0 + lane < hw, col, 0.0)
        total = total + jnp.sum(col, axis=-1, keepdims=True)
        q0 += w

    # Accumulate into lane 0 of this core's private (R, 128) output slab.
    psum_ref[:, 0:1] = psum_ref[:, 0:1] + total


# ---------------------------------------------------------------------------
# Gate: tiny transformer on the (B, C) mean token, runs exactly once.
# ---------------------------------------------------------------------------
def gate_kernel(token_ref,
                wr_t_ref, br_ref, wqkv_t_ref, bqkv_ref, wo_t_ref, bo_ref,
                ln1w_ref, ln1b_ref, w1_t_ref, b1_ref, w2_t_ref, b2_ref,
                ln2w_ref, ln2b_ref, we_t_ref, be_ref,
                scale_ref, *, num_heads):
    token = token_ref[...]                                          # (B, C) f32

    # ---- dim_reduce ----
    t = jnp.dot(token, wr_t_ref[...],
                preferred_element_type=jnp.float32) + br_ref[0, :]   # (B, D)
    D = t.shape[-1]
    head_dim = D // num_heads

    # ---- self-attention (the B axis is the sequence axis) ----
    qkv = jnp.dot(t, wqkv_t_ref[...],
                  preferred_element_type=jnp.float32) + bqkv_ref[0, :]  # (B, 3D)
    q = qkv[:, 0 * D:1 * D]
    k = qkv[:, 1 * D:2 * D]
    v = qkv[:, 2 * D:3 * D]

    inv_sqrt_hd = 1.0 / float(np.sqrt(head_dim))
    head_outs = []
    for h in range(num_heads):
        sl = slice(h * head_dim, (h + 1) * head_dim)
        s = lax.dot_general(q[:, sl] * inv_sqrt_hd, k[:, sl],
                            (((1,), (1,)), ((), ())),
                            preferred_element_type=jnp.float32)      # (B, B)
        s = s - jnp.max(s, axis=-1, keepdims=True)
        e = jnp.exp(s)
        pattn = e / jnp.sum(e, axis=-1, keepdims=True)
        head_outs.append(jnp.dot(pattn, v[:, sl],
                                 preferred_element_type=jnp.float32))
    attn = jnp.concatenate(head_outs, axis=-1)                       # (B, D)
    attn = jnp.dot(attn, wo_t_ref[...],
                   preferred_element_type=jnp.float32) + bo_ref[0, :]

    # ---- post-norm encoder layer (relu FFN) ----
    s1 = _layer_norm(t + attn, ln1w_ref[0, :], ln1b_ref[0, :])
    h1 = jnp.maximum(
        jnp.dot(s1, w1_t_ref[...],
                preferred_element_type=jnp.float32) + b1_ref[0, :], 0.0)
    h2 = jnp.dot(h1, w2_t_ref[...],
                 preferred_element_type=jnp.float32) + b2_ref[0, :]
    s2 = _layer_norm(s1 + h2, ln2w_ref[0, :], ln2b_ref[0, :])

    # ---- dim_expand + sigmoid; fold `x*gate + x` into one multiply ----
    gate = jax.nn.sigmoid(
        jnp.dot(s2, we_t_ref[...],
                preferred_element_type=jnp.float32) + be_ref[0, :])  # (B, C)
    scale_ref[...] = gate + 1.0


# ---------------------------------------------------------------------------
# Pass 2: elementwise apply in native dtype (mem-bound, megacore-parallel).
# ---------------------------------------------------------------------------
def apply_kernel(scale_ref, x_ref, o_ref):
    scale = scale_ref[...].astype(x_ref.dtype)          # (R, 1) tiny down-cast
    o_ref[...] = x_ref[...] * scale                      # lane broadcast per row


def _pick_hw_tile(hw, rows, itemsize, target_bytes):
    """Largest lane extent (multiple of 128, or the full HW) within the byte budget."""
    max_lanes = max(128, int(target_bytes) // max(1, rows * itemsize))
    if hw <= max_lanes:
        return hw                       # full-extent block (always legal)
    return (max_lanes // 128) * 128


def channel_transformer(x, p, num_heads, *, target_block_bytes=4 << 20):
    B, C, H, W = x.shape
    R, HW = B * C, H * W
    itemsize = x.dtype.itemsize
    x2 = x.reshape(R, HW)               # free row-major reshape

    # ----------------------- pass 1: spatial sum -----------------------
    hw_tile_r = _pick_hw_tile(HW, R, itemsize, 2 * target_block_bytes)
    n_chunks = pl.cdiv(HW, hw_tile_r)
    n_par = 2 if n_chunks >= 2 else 1          # leading "parallel" axis
    npc = pl.cdiv(n_chunks, n_par)
    padded_steps = (n_par * npc != n_chunks)
    need_mask = padded_steps or (HW % hw_tile_r != 0)
    # static inner-reduction chunk width (bounds vreg-resident intermediates)
    chunk_w = min(hw_tile_r, max(128, ((32768 // max(1, R)) // 128) * 128))

    if padded_steps:
        # Clamp so no block request is fully out of bounds; the in-kernel mask
        # zeroes the duplicated/padded data anyway.
        x_r_index = lambda pi, j: (0, jnp.minimum(pi * npc + j, n_chunks - 1))
    else:
        x_r_index = lambda pi, j: (0, pi * npc + j)

    psum = pl.pallas_call(
        functools.partial(reduce_kernel, hw=HW, hw_tile=hw_tile_r, npc=npc,
                          chunk_w=chunk_w, need_mask=need_mask),
        out_shape=jax.ShapeDtypeStruct((R, n_par * 128), jnp.float32),
        grid=(n_par, npc),
        in_specs=[pl.BlockSpec((R, hw_tile_r), x_r_index)],
        out_specs=pl.BlockSpec((R, 128), lambda pi, j: (0, pi)),
        compiler_params=pltpu.CompilerParams(
            dimension_semantics=("parallel", "arbitrary"),
            vmem_limit_bytes=_VMEM_LIMIT),
        cost_estimate=pl.CostEstimate(
            flops=R * HW, transcendentals=0,
            bytes_accessed=R * HW * itemsize + R * n_par * 128 * 4),
    )(x2)

    # Tiny glue: finish the deferred reduction and form the mean token.
    token = (jnp.sum(psum, axis=-1) * (1.0 / HW)).reshape(B, C)      # (B, C) f32

    # ----------------------- gate: runs once ---------------------------
    weight_args = (p["wr_t"], p["br"], p["wqkv_t"], p["bqkv"], p["wo_t"], p["bo"],
                   p["ln1w"], p["ln1b"], p["w1_t"], p["b1"], p["w2_t"], p["b2"],
                   p["ln2w"], p["ln2b"], p["we_t"], p["be"])
    gate_in = (token,) + weight_args
    scale = pl.pallas_call(
        functools.partial(gate_kernel, num_heads=num_heads),
        out_shape=jax.ShapeDtypeStruct((B, C), jnp.float32),
        grid=(1,),
        in_specs=[pl.BlockSpec(a.shape, lambda i: (0, 0)) for a in gate_in],
        out_specs=pl.BlockSpec((B, C), lambda i: (0, 0)),
        compiler_params=pltpu.CompilerParams(vmem_limit_bytes=_VMEM_LIMIT),
    )(*gate_in)

    # ----------------------- pass 2: apply scale -----------------------
    hw_tile_a = _pick_hw_tile(HW, R, itemsize, target_block_bytes)
    n_tiles = pl.cdiv(HW, hw_tile_a)
    out2 = pl.pallas_call(
        apply_kernel,
        out_shape=jax.ShapeDtypeStruct((R, HW), x.dtype),
        grid=(n_tiles,),
        in_specs=[pl.BlockSpec((R, 1), lambda i: (0, 0)),
                  pl.BlockSpec((R, hw_tile_a), lambda i: (0, i))],
        out_specs=pl.BlockSpec((R, hw_tile_a), lambda i: (0, i)),
        compiler_params=pltpu.CompilerParams(
            dimension_semantics=("parallel",),
            vmem_limit_bytes=_VMEM_LIMIT),
        cost_estimate=pl.CostEstimate(
            flops=R * HW, transcendentals=0,
            bytes_accessed=2 * R * HW * itemsize),
    )(scale.reshape(R, 1), x2)

    return out2.reshape(B, C, H, W)


# ---------------------------------------------------------------------------
# Params (PyTorch layout), one-time kernel-layout prep, and a JAX reference.
# ---------------------------------------------------------------------------
def init_params(key, channels, dim_reduction, dim_feedforward):
    C, D, FF = channels, dim_reduction, dim_feedforward
    ks = jax.random.split(key, 12)

    def w(k, shape, fan_in):
        return (jax.random.normal(k, shape, jnp.float32) / np.sqrt(fan_in))

    return {
        "wr": w(ks[0], (D, C), C),        "br": w(ks[1], (1, D), D),
        "wqkv": w(ks[2], (3 * D, D), D),  "bqkv": w(ks[3], (1, 3 * D), D),
        "wo": w(ks[4], (D, D), D),        "bo": w(ks[5], (1, D), D),
        "ln1w": jnp.ones((1, D), jnp.float32), "ln1b": jnp.zeros((1, D), jnp.float32),
        "w1": w(ks[6], (FF, D), D),       "b1": w(ks[7], (1, FF), D),
        "w2": w(ks[8], (D, FF), FF),      "b2": w(ks[9], (1, D), FF),
        "ln2w": jnp.ones((1, D), jnp.float32), "ln2b": jnp.zeros((1, D), jnp.float32),
        "we": w(ks[10], (C, D), D),       "be": w(ks[11], (1, C), D),
    }


def prepare_params(params):
    """One-time conversion to kernel layout: pre-transpose every weight matrix."""
    return {
        "wr_t": jnp.asarray(params["wr"].T),     "br": params["br"],
        "wqkv_t": jnp.asarray(params["wqkv"].T), "bqkv": params["bqkv"],
        "wo_t": jnp.asarray(params["wo"].T),     "bo": params["bo"],
        "ln1w": params["ln1w"], "ln1b": params["ln1b"],
        "w1_t": jnp.asarray(params["w1"].T),     "b1": params["b1"],
        "w2_t": jnp.asarray(params["w2"].T),     "b2": params["b2"],
        "ln2w": params["ln2w"], "ln2b": params["ln2b"],
        "we_t": jnp.asarray(params["we"].T),     "be": params["be"],
    }


def reference(x, params, num_heads):
    """Pure-JAX reference of the PyTorch forward (eval mode)."""
    B, C, H, W = x.shape
    token = x.reshape(B, C, -1).mean(axis=2)
    t = token @ params["wr"].T + params["br"][0]
    D = t.shape[-1]
    hd = D // num_heads
    qkv = t @ params["wqkv"].T + params["bqkv"][0]
    q, k, v = qkv[:, :D], qkv[:, D:2 * D], qkv[:, 2 * D:]
    outs = []
    for h in range(num_heads):
        sl = slice(h * hd, (h + 1) * hd)
        s = (q[:, sl] / jnp.sqrt(hd)) @ k[:, sl].T
        p = jax.nn.softmax(s, axis=-1)
        outs.append(p @ v[:, sl])
    attn = jnp.concatenate(outs, -1) @ params["wo"].T + params["bo"][0]

    def ln(u, w, b):
        mu = u.mean(-1, keepdims=True)
        var = ((u - mu) ** 2).mean(-1, keepdims=True)
        return (u - mu) / jnp.sqrt(var + 1e-5) * w + b

    s1 = ln(t + attn, params["ln1w"][0], params["ln1b"][0])
    h1 = jnp.maximum(s1 @ params["w1"].T + params["b1"][0], 0.0)
    s2 = ln(s1 + h1 @ params["w2"].T + params["b2"][0],
            params["ln2w"][0], params["ln2b"][0])
    gate = jax.nn.sigmoid(s2 @ params["we"].T + params["be"][0])
    return x * gate[:, :, None, None] + x


if __name__ == "__main__":
    # channels=8, dim_reduction=32, heads=4, depth=1,
    # FF = nn.TransformerEncoderLayer default dim_feedforward.
    C, D, HEADS, FF = 8, 32, 4, 2048

    key = jax.random.PRNGKey(0)
    kp, kx1, kx2, kx3 = jax.random.split(key, 4)
    params = init_params(kp, C, D, FF)
    prepped = prepare_params(params)

    # (1) small single-tile fast path,
    # (2) small target_block_bytes forces multi-chunk tiling + megacore split,
    # (3) ragged HW exercises the cdiv grid, lane masking and clamped index map.
    cases = [
        ((2, C, 16, 16), None, kx1),
        ((2, C, 64, 64), 64 * 1024, kx2),
        ((2, C, 48, 96), 64 * 1024, kx3),
    ]
    for shape, tb, kx in cases:
        x = jax.random.normal(kx, shape, jnp.float32)
        kwargs = {} if tb is None else {"target_block_bytes": tb}
        out = jax.block_until_ready(channel_transformer(x, prepped, HEADS, **kwargs))
        ref = jax.block_until_ready(reference(x, params, HEADS))
        np.testing.assert_allclose(np.asarray(out), np.asarray(ref),
                                   rtol=2e-3, atol=2e-3)

    print("KERNEL_OK")
</pallas_src>

<mosaic_0001>
module attributes {stable_mosaic.version = 11 : i64} {
  func.func @reduce_kernel(%arg0: i32, %arg1: i32, %arg2: memref<16x256xf32, #tpu.memory_space<vmem>>, %arg3: memref<16x128xf32, #tpu.memory_space<vmem>>) attributes {dimension_semantics = [#tpu.dimension_semantics<parallel>, #tpu.dimension_semantics<arbitrary>], iteration_bounds = array<i64: 1, 1>, scalar_prefetch = 0 : i64, scratch_operands = 0 : i64, tpu.core_type = #tpu.core_type<tc>, window_params = [{transform_indices = @transform_0, window_bounds = array<i64: 16, 256>}, {transform_indices = @transform_1, window_bounds = array<i64: 16, 128>}]} {
    %c0_i32 = arith.constant 0 : i32
    %0 = arith.cmpi eq, %arg1, %c0_i32 : i32
    %1 = arith.extui %0 : i1 to i32
    %c0_i32_0 = arith.constant 0 : i32
    %2 = arith.cmpi ne, %1, %c0_i32_0 : i32
    scf.if %2 {
      %cst_7 = arith.constant 0.000000e+00 : f32
      %11 = vector.broadcast %cst_7 : f32 to vector<16x128xf32>
      %c0_8 = arith.constant 0 : index
      %c0_9 = arith.constant 0 : index
      %12 = vector.load %arg3[%c0_8, %c0_9] : memref<16x128xf32, #tpu.memory_space<vmem>>, vector<16x128xf32>
      tpu.vector_store %arg3[%c0_8, %c0_9], %11 {strides = array<i32>} : memref<16x128xf32, #tpu.memory_space<vmem>>, vector<16x128xf32>,
    } else {
    }
    %cst = arith.constant 0.000000e+00 : f32
    %3 = vector.broadcast %cst : f32 to vector<16x1xf32>
    %c0 = arith.constant 0 : index
    %c0_1 = arith.constant 0 : index
    %4 = vector.load %arg2[%c0, %c0_1] : memref<16x256xf32, #tpu.memory_space<vmem>>, vector<16x256xf32>
    %cst_2 = arith.constant dense<0.000000e+00> : vector<16xf32>
    %5 = vector.multi_reduction <add>, %4, %cst_2 [1] : vector<16x256xf32> to vector<16xf32>
    %6 = vector.shape_cast %5 : vector<16xf32> to vector<16x1xf32>
    %7 = arith.addf %3, %6 : vector<16x1xf32>
    %c0_3 = arith.constant 0 : index
    %c0_4 = arith.constant 0 : index
    %8 = vector.load %arg3[%c0_3, %c0_4] : memref<16x128xf32, #tpu.memory_space<vmem>>, vector<16x1xf32>
    %9 = arith.addf %8, %7 : vector<16x1xf32>
    %c0_5 = arith.constant 0 : index
    %c0_6 = arith.constant 0 : index
    %10 = vector.load %arg3[%c0_5, %c0_6] : memref<16x128xf32, #tpu.memory_space<vmem>>, vector<16x1xf32>
    tpu.vector_store %arg3[%c0_5, %c0_6], %9 {strides = array<i32>} : memref<16x128xf32, #tpu.memory_space<vmem>>, vector<16x1xf32>,
    return
  }
  func.func @transform_0(%arg0: i32, %arg1: i32) -> (i32, i32) {
    %c1_i32 = arith.constant 1 : i32
    %0 = arith.muli %arg0, %c1_i32 : i32
    %1 = arith.addi %0, %arg1 : i32
    %c0_i32 = arith.constant 0 : i32
    %c0_i32_0 = arith.constant 0 : i32
    return %c0_i32, %1 : i32, i32
  }
  func.func @transform_1(%arg0: i32, %arg1: i32) -> (i32, i32) {
    %c0_i32 = arith.constant 0 : i32
    %c0_i32_0 = arith.constant 0 : i32
    return %c0_i32, %arg0 : i32, i32
  }
}

</mosaic_0001>

<llo_original>
// kernel: tpu_custom_call.1
$region0: #{tpu_custom_call.1}
  #allocation0 [shape = 'u32[]', space=smem, size = 0x4, offset = 0x4, fixed_abs, tag = 'smem constant byte address 0x4 - core index']
  #allocation1 [shape = 'u32[144,128]{1,0:T(1,128)}', space=vmem, size = 0x12000, scoped, tag = 'internal scratch']
  %s0 = inlined_call_operand.hbm [shape: f32[16,256], index: 0, kind: input, shape index: {}]
  %s1 = inlined_call_operand.hbm [shape: f32[16,128], index: 1, kind: output, shape index: {}]
  %s2 = sld [smem:[#allocation0]]
  $region22: #{tpu_custom_call.1} parent=0
    _
  %s4 = ssub.s32 1, %s2
  %s5 = scalar_select 0, %s4, %s2
  $region1: #{tpu_custom_call.1} parent=0
    #allocation2 [shape = 'u8[16384]{0}', space=vmem, size = 0x4000, scoped, tag = 'input window, operand 0, single buffered']
    #allocation3 [shape = 's32[1]{0}', space=sflag, size = 0x4, scoped, tag = 'scoped memory for tpu_custom_call.1']
    #allocation4 [shape = 's32[1]{0}', space=sflag, size = 0x4, scoped, tag = 'scoped memory for tpu_custom_call.1']
    #allocation5 [shape = 'u8[8192]{0}', space=vmem, size = 0x2000, scoped, tag = 'output window, operand 0, single buffered']
    %6 = vsyncpa [#allocation3], 0
    %7 = vsyncpa [#allocation4], 0
    // Predicated region
    $region2: #{tpu_custom_call.1} parent=1 // pred_check
      _
    $region3: #{tpu_custom_call.1} parent=1 // pred_check_branch
      %9 = sbr.rel (0) target = $region5
    $region4: #{tpu_custom_call.1} parent=1 // pred_region
      %s10 = sadd.s32 0, 0
      %s11 = smul.u32 2, %s10
      %s13 = ssub.s32 512, 512
      %14 = vsyncadd [#allocation3], %s13
      %s15 = smul.addr %s11, 128
      %s16 = scalar_lea.hbm %s0, %s15
      %s17 = sshll.u32 [#allocation2], 4
      %s18 = int_to_ptr.vmem [resolvable:$true] %s17
      %23 = dma.hbm_to_vmem [thread:$0]  %s16, 512, %s18, [#allocation3], 256, 256, 16
    $region5: #{tpu_custom_call.1} parent=1 // pred_fallthru
      _
    // Predicated region
    $region6: #{tpu_custom_call.1} parent=1 // pred_check
      _
    $region7: #{tpu_custom_call.1} parent=1 // pred_check_branch
      %25 = sbr.rel (0) target = $region9
    $region8: #{tpu_custom_call.1} parent=1 // pred_region
      %26 = dma.done [#allocation3], 512
    $region9: #{tpu_custom_call.1} parent=1 // pred_fallthru
      _
    %s27 = sadd.s32 0, 0
    %s28 = smul.u32 2, %s27
    %p29 = scmp.eq.s32.totalorder 0, 0
    // Predicated region
    $region10: #{tpu_custom_call.1} parent=1 // pred_check
      %p30 = pneg %p29
    $region11: #{tpu_custom_call.1} parent=1 // pred_check_branch
      %32 = sbr.rel (%p30) target = $region13
    $region12: #{tpu_custom_call.1} parent=1 // pred_region
      %33 = vst [vmem:[#allocation5] sm:$0xff] 0.0
      %34 = vst [vmem:[#allocation5 + $0x8] sm:$0xff] 0.0
    $region13: #{tpu_custom_call.1} parent=1 // pred_fallthru
      _
    %v35 = vld [vmem:[#allocation2] sm:$0xff]
    %v36 = vld [vmem:[#allocation2 + $0x8] sm:$0xff]
    %v37 = vld [vmem:[#allocation2 + $0x10] sm:$0xff]
    %v38 = vld [vmem:[#allocation2 + $0x18] sm:$0xff]
    %v39 = vadd.f32 %v35, %v36
    %40 = vadd.xlane.f32.xlu0 %v39
    %v41 = vpop.xlane.xlu0 %40
    %v42 = vadd.f32 %v37, %v38
    %43 = vadd.xlane.f32.xlu0 %v42
    %v44 = vpop.xlane.xlu0 %43
    %v45 = vadd.f32 %v41, 0.0
    %v46 = vadd.f32 %v44, 0.0
    %v47 = vld [vmem:[#allocation5] sm:$0xff]
    %v48 = vld [vmem:[#allocation5 + $0x8] sm:$0xff]
    %v49 = vadd.f32 %v47, %v45
    %v50 = vadd.f32 %v48, %v46
    %vm51 = vcmask 7168
    %52 = vst.msk [vmem:[#allocation5] sm:$0xff] %vm51, %v49
    %53 = vst.msk [vmem:[#allocation5 + $0x8] sm:$0xff] %vm51, %v50
    // Predicated region
    $region14: #{tpu_custom_call.1} parent=1 // pred_check
      _
    $region15: #{tpu_custom_call.1} parent=1 // pred_check_branch
      %55 = sbr.rel (0) target = $region17
    $region16: #{tpu_custom_call.1} parent=1 // pred_region
      %s57 = ssub.s32 256, 256
      %58 = vsyncadd [#allocation4], %s57
      %s59 = sshll.u32 [#allocation5], 4
      %s60 = int_to_ptr.vmem [resolvable:$true] %s59
      %65 = dma.vmem_to_hbm [thread:$0]  %s60, 256, %s1, [#allocation4], 128, 128, 8
    $region17: #{tpu_custom_call.1} parent=1 // pred_fallthru
      _
    // Predicated region
    $region18: #{tpu_custom_call.1} parent=1 // pred_check
      _
    $region19: #{tpu_custom_call.1} parent=1 // pred_check_branch
      %67 = sbr.rel (0) target = $region21
    $region20: #{tpu_custom_call.1} parent=1 // pred_region
      %68 = dma.done [#allocation4], 256
    $region21: #{tpu_custom_call.1} parent=1 // pred_fallthru
      _
    %69 = vsyncpa [#allocation3], 1
    %70 = vsyncpa [#allocation4], 1

</llo_original>
